<compile_context>
chip_gen: v7x
topology: tpu7x:2x2x1
jax: 0.10.0
libtpu: 0.0.40
codegen_flags: <defaults>
</compile_context>

<pallas_src>
import jax
import jax.numpy as jnp
from jax.experimental import pallas as pl
from jax.experimental.pallas import tpu as pltpu

_NEG_SLOPE = 0.01
_LANE = 128
_SUBLANE = 8


def _round_up(x, m):
    return ((x + m - 1) // m) * m


# -----------------------------------------------------------------------------
# Pallas kernel: fused concat + full propNN MLP for one batch tile.
# -----------------------------------------------------------------------------
def _make_fused_mlp_kernel(n_layers, negative_slope=_NEG_SLOPE):
    """Kernel args: (za, zx, w0a, w0x, b0, w1, b1, ..., w_{L-1}, b_{L-1}, out)."""

    def kernel(*refs):
        za_ref, zx_ref, w0a_ref, w0x_ref, b0_ref = refs[:5]
        out_ref = refs[-1]

        # In-kernel bf16 cast: avoids a separate padded bf16 HBM copy of the
        # inputs and rides idle VPU slots (kernel is HBM-bound).
        za = za_ref[...].astype(jnp.bfloat16)
        zx = zx_ref[...].astype(jnp.bfloat16)

        # Layer 0 fused with the concat:  concat(za, zx) @ W0 = za@W0a + zx@W0x
        y = (jnp.dot(za, w0a_ref[...], preferred_element_type=jnp.float32)
             + jnp.dot(zx, w0x_ref[...], preferred_element_type=jnp.float32)
             + b0_ref[...].astype(jnp.float32))
        if n_layers > 1:
            y = jnp.maximum(y, negative_slope * y)  # LeakyReLU

        for i in range(1, n_layers):
            w_ref = refs[3 + 2 * i]
            b_ref = refs[4 + 2 * i]
            y = (jnp.dot(y.astype(w_ref.dtype), w_ref[...],
                         preferred_element_type=jnp.float32)
                 + b_ref[...].astype(jnp.float32))
            if i < n_layers - 1:
                y = jnp.maximum(y, negative_slope * y)

        # Only column 0 of the lane-padded final layer is real data: write a
        # (tile_b, 1) block -> 4 B/row of HBM writeback instead of 512 B/row.
        out_ref[...] = y[:, 0:1].astype(out_ref.dtype)

    return kernel


# -----------------------------------------------------------------------------
# Wrapper: batch-tiled pallas_call with resident (lane-padded, bf16) weights.
# -----------------------------------------------------------------------------
def prop_nn_pallas(z_adj, z_x, weights_p, biases_p, out_dim=1, *, tile_b_max=2048):
    """z_adj: (B, b_size) f32, z_x: (B, a_size) f32 -> (B, out_dim) f32."""
    B, b_size = z_adj.shape
    _, a_size = z_x.shape
    n_layers = len(weights_p)

    z_adj = z_adj.astype(jnp.float32)
    z_x = z_x.astype(jnp.float32)

    # Split the first (padded, bf16) weight by input rows to fuse the concat.
    w0 = weights_p[0]
    w0a, w0x = w0[:b_size], w0[b_size:]

    operands = [z_adj, z_x, w0a, w0x, biases_p[0]]
    for w, b in zip(weights_p[1:], biases_p[1:]):
        operands.append(w)
        operands.append(b)
    resident = int(sum(op.nbytes for op in operands[2:]))

    # ---- batch tile selection ------------------------------------------------
    # Per-row VMEM footprint: double-buffered f32 input/output tiles plus the
    # in-kernel bf16 copies and a few f32 (tile_b, 128) intermediates.
    per_row = (2 * ((b_size + a_size) * 4 + _LANE * 4)
               + (b_size + a_size) * 2 + 4 * _LANE * 4)
    budget = (28 << 20) - 2 * resident
    tile_cap = max(_SUBLANE, (budget // max(per_row, 1)) // _SUBLANE * _SUBLANE)

    if B <= 256:
        tile_b = B                                    # single block, dims == array dims
    else:
        # at least 2 grid steps so both v7x TensorCores get work
        tile_b = min(tile_b_max, _round_up(pl.cdiv(B, 2), _SUBLANE))
    tile_b = max(1, min(tile_b, tile_cap, B))
    grid = (pl.cdiv(B, tile_b),)                      # partial last block is clipped

    in_specs = [
        pl.BlockSpec((tile_b, b_size), lambda i: (i, 0)),
        pl.BlockSpec((tile_b, a_size), lambda i: (i, 0)),
    ]
    # Weights / biases: full block, constant index map -> VMEM-resident.
    for op in operands[2:]:
        in_specs.append(pl.BlockSpec(op.shape, lambda i: (0, 0)))

    out_specs = pl.BlockSpec((tile_b, 1), lambda i: (i, 0))

    # Cost estimate (padded widths).
    h0 = w0.shape[1]
    flops = 2 * B * (b_size + a_size) * h0
    for w in weights_p[1:]:
        flops += 2 * B * w.shape[0] * w.shape[1]
    bytes_accessed = int(z_adj.nbytes + z_x.nbytes + resident + B * 4)
    cost = pl.CostEstimate(flops=flops, transcendentals=0,
                           bytes_accessed=bytes_accessed)

    # VMEM budget from the actual buffers, capped at 40 MiB (v7x headroom).
    tiles_bytes = 2 * tile_b * ((b_size + a_size) * 4 + _LANE * 4)
    scratch_bytes = tile_b * ((b_size + a_size) * 2 + 4 * _LANE * 4)
    vmem_limit = int(min(40 << 20,
                         max(16 << 20,
                             2 * resident + tiles_bytes + scratch_bytes + (4 << 20))))

    out = pl.pallas_call(
        _make_fused_mlp_kernel(n_layers),
        out_shape=jax.ShapeDtypeStruct((B, 1), jnp.float32),
        grid=grid,
        in_specs=in_specs,
        out_specs=out_specs,
        compiler_params=pltpu.CompilerParams(
            dimension_semantics=("parallel",),
            vmem_limit_bytes=vmem_limit,
        ),
        cost_estimate=cost,
    )(*operands)

    return out[:, :out_dim]


# -----------------------------------------------------------------------------
# Parameter construction (mirrors nn.Linear default init) + lane padding.
# -----------------------------------------------------------------------------
def init_prop_nn_params(key, latent_size, hidden_size):
    """vh = (latent,) + hidden + (1,); Linear(vh[i] -> vh[i+1]) per layer.
    Weights stored transposed as (in, out) so y = x @ W + b."""
    vh = (latent_size,) + tuple(hidden_size) + (1,)
    weights, biases = [], []
    for i in range(len(vh) - 1):
        fan_in, fan_out = vh[i], vh[i + 1]
        key, kw, kb = jax.random.split(key, 3)
        bound = 1.0 / (fan_in ** 0.5)
        w = jax.random.uniform(kw, (fan_in, fan_out), jnp.float32, -bound, bound)
        b = jax.random.uniform(kb, (1, fan_out), jnp.float32, -bound, bound)
        weights.append(w)
        biases.append(b)
    return weights, biases


def pad_and_cast_params(weights, biases):
    """Zero-pad every output width (and matching next-layer input width) up to
    a multiple of 128 lanes; cast weights to bf16, keep biases f32. Exact."""
    weights_p, biases_p = [], []
    prev_out_pad = None
    for i, (w, b) in enumerate(zip(weights, biases)):
        din, dout = w.shape
        din_pad = din if i == 0 else prev_out_pad
        dout_pad = _round_up(dout, _LANE)
        wp = jnp.zeros((din_pad, dout_pad), jnp.float32).at[:din, :dout].set(w)
        bp = jnp.zeros((1, dout_pad), jnp.float32).at[:, :dout].set(b)
        weights_p.append(wp.astype(jnp.bfloat16))
        biases_p.append(bp)
        prev_out_pad = dout_pad
    return weights_p, biases_p


# -----------------------------------------------------------------------------
# MoFlowProp forward
# -----------------------------------------------------------------------------
def moflow_prop_forward(adj, x, weights_p, biases_p):
    """adj: (B, n_bond, n, n), x: (B, n, node_dim) -> (output, h, sum_log_det)."""
    B = adj.shape[0]
    # TODO(synk): the real MoFlow coupling/actnorm flow (z = f(adj, x)) is not
    #             in the snippet; encode() here is the identity flow
    #             (flatten + concat) with log-det 0.
    z_adj = adj.reshape(B, -1).astype(jnp.float32)
    z_x = x.reshape(B, -1).astype(jnp.float32)
    h = jnp.concatenate([z_adj, z_x], axis=1)          # returned latent (f32)
    sum_log_det_jacs = jnp.zeros((B,), jnp.float32)

    output = prop_nn_pallas(z_adj, z_x, weights_p, biases_p, out_dim=1)
    return output, h, sum_log_det_jacs


# -----------------------------------------------------------------------------
# Pure-JAX reference (same bf16-dot / f32-accumulate precision path).
# -----------------------------------------------------------------------------
def reference_prop_nn(h, weights, biases, negative_slope=_NEG_SLOPE):
    y = h
    n = len(weights)
    for i, (w, b) in enumerate(zip(weights, biases)):
        y = jnp.dot(y.astype(jnp.bfloat16), w.astype(jnp.bfloat16),
                    preferred_element_type=jnp.float32) + b
        if i < n - 1:
            y = jnp.maximum(y, negative_slope * y)
    return y


if __name__ == "__main__":
    key = jax.random.PRNGKey(0)

    # Small synthetic molecule-graph shapes.
    B, n_bond, n_node, node_dim = 2, 4, 8, 5
    b_size = n_bond * n_node * n_node       # 256  (adj latent, flattened)
    a_size = n_node * node_dim              # 40   (node latent, flattened)
    latent_size = b_size + a_size           # 296
    hidden_size = (32, 16)

    k_adj, k_x, k_par = jax.random.split(key, 3)
    adj = jax.random.normal(k_adj, (B, n_bond, n_node, n_node), jnp.float32)
    x = jax.random.normal(k_x, (B, n_node, node_dim), jnp.float32)

    weights, biases = init_prop_nn_params(k_par, latent_size, hidden_size)
    weights_p, biases_p = pad_and_cast_params(weights, biases)

    output, h, sldj = moflow_prop_forward(adj, x, weights_p, biases_p)
    output = jax.block_until_ready(output)

    ref = reference_prop_nn(h, weights, biases)
    assert output.shape == (B, 1)
    assert h.shape == (B, latent_size)
    assert sldj.shape == (B,)
    assert jnp.allclose(output, ref, atol=1e-3, rtol=1e-3), (output, ref)

    print("KERNEL_OK")
</pallas_src>

<mosaic_0001>
module attributes {stable_mosaic.version = 11 : i64} {
  func.func @kernel(%arg0: i32, %arg1: memref<2x256xf32, #tpu.memory_space<vmem>>, %arg2: memref<2x40xf32, #tpu.memory_space<vmem>>, %arg3: memref<256x128xbf16, #tpu.memory_space<vmem>>, %arg4: memref<40x128xbf16, #tpu.memory_space<vmem>>, %arg5: memref<1x128xf32, #tpu.memory_space<vmem>>, %arg6: memref<128x128xbf16, #tpu.memory_space<vmem>>, %arg7: memref<1x128xf32, #tpu.memory_space<vmem>>, %arg8: memref<128x128xbf16, #tpu.memory_space<vmem>>, %arg9: memref<1x128xf32, #tpu.memory_space<vmem>>, %arg10: memref<2x1xf32, #tpu.memory_space<vmem>>) attributes {dimension_semantics = [#tpu.dimension_semantics<parallel>], iteration_bounds = array<i64: 1>, scalar_prefetch = 0 : i64, scratch_operands = 0 : i64, tpu.core_type = #tpu.core_type<tc>, window_params = [{transform_indices = @transform_0, window_bounds = array<i64: 2, 256>}, {transform_indices = @transform_1, window_bounds = array<i64: 2, 40>}, {pipeline_mode = #tpu.pipeline_mode<synchronous>, transform_indices = @transform_2, window_bounds = array<i64: 256, 128>}, {pipeline_mode = #tpu.pipeline_mode<synchronous>, transform_indices = @transform_3, window_bounds = array<i64: 40, 128>}, {pipeline_mode = #tpu.pipeline_mode<synchronous>, transform_indices = @transform_4, window_bounds = array<i64: 1, 128>}, {pipeline_mode = #tpu.pipeline_mode<synchronous>, transform_indices = @transform_5, window_bounds = array<i64: 128, 128>}, {pipeline_mode = #tpu.pipeline_mode<synchronous>, transform_indices = @transform_6, window_bounds = array<i64: 1, 128>}, {pipeline_mode = #tpu.pipeline_mode<synchronous>, transform_indices = @transform_7, window_bounds = array<i64: 128, 128>}, {pipeline_mode = #tpu.pipeline_mode<synchronous>, transform_indices = @transform_8, window_bounds = array<i64: 1, 128>}, {transform_indices = @transform_9, window_bounds = array<i64: 2, 1>}]} {
    %c0 = arith.constant 0 : index
    %c0_0 = arith.constant 0 : index
    %0 = vector.load %arg1[%c0, %c0_0] : memref<2x256xf32, #tpu.memory_space<vmem>>, vector<2x256xf32>
    %1 = arith.truncf %0 : vector<2x256xf32> to vector<2x256xbf16>
    %c0_1 = arith.constant 0 : index
    %c0_2 = arith.constant 0 : index
    %2 = vector.load %arg2[%c0_1, %c0_2] : memref<2x40xf32, #tpu.memory_space<vmem>>, vector<2x40xf32>
    %3 = arith.truncf %2 : vector<2x40xf32> to vector<2x40xbf16>
    %c0_3 = arith.constant 0 : index
    %c0_4 = arith.constant 0 : index
    %4 = vector.load %arg3[%c0_3, %c0_4] : memref<256x128xbf16, #tpu.memory_space<vmem>>, vector<256x128xbf16>
    %cst = arith.constant dense<0.000000e+00> : vector<2x128xf32>
    %5 = tpu.matmul %1, %4, %cst {dimension_numbers = #tpu.dot_dimension_numbers<[1], [0], [0], [1], [0, 0, 1, 1], [], []>} : vector<2x256xbf16>, vector<256x128xbf16>, vector<2x128xf32> -> vector<2x128xf32>
    %c0_5 = arith.constant 0 : index
    %c0_6 = arith.constant 0 : index
    %6 = vector.load %arg4[%c0_5, %c0_6] : memref<40x128xbf16, #tpu.memory_space<vmem>>, vector<40x128xbf16>
    %cst_7 = arith.constant dense<0.000000e+00> : vector<2x128xf32>
    %7 = tpu.matmul %3, %6, %cst_7 {dimension_numbers = #tpu.dot_dimension_numbers<[1], [0], [0], [1], [0, 0, 1, 1], [], []>} : vector<2x40xbf16>, vector<40x128xbf16>, vector<2x128xf32> -> vector<2x128xf32>
    %8 = arith.addf %5, %7 : vector<2x128xf32>
    %c0_8 = arith.constant 0 : index
    %c0_9 = arith.constant 0 : index
    %9 = vector.load %arg5[%c0_8, %c0_9] : memref<1x128xf32, #tpu.memory_space<vmem>>, vector<1x128xf32>
    %10 = vector.broadcast %9 : vector<1x128xf32> to vector<2x128xf32>
    %11 = arith.addf %8, %10 : vector<2x128xf32>
    %cst_10 = arith.constant 0.00999999977 : f32
    %12 = vector.broadcast %cst_10 : f32 to vector<2x128xf32>
    %13 = arith.mulf %12, %11 : vector<2x128xf32>
    %14 = arith.maximumf %11, %13 : vector<2x128xf32>
    %15 = arith.truncf %14 : vector<2x128xf32> to vector<2x128xbf16>
    %c0_11 = arith.constant 0 : index
    %c0_12 = arith.constant 0 : index
    %16 = vector.load %arg6[%c0_11, %c0_12] : memref<128x128xbf16, #tpu.memory_space<vmem>>, vector<128x128xbf16>
    %cst_13 = arith.constant dense<0.000000e+00> : vector<2x128xf32>
    %17 = tpu.matmul %15, %16, %cst_13 {dimension_numbers = #tpu.dot_dimension_numbers<[1], [0], [0], [1], [0, 0, 1, 1], [], []>} : vector<2x128xbf16>, vector<128x128xbf16>, vector<2x128xf32> -> vector<2x128xf32>
    %c0_14 = arith.constant 0 : index
    %c0_15 = arith.constant 0 : index
    %18 = vector.load %arg7[%c0_14, %c0_15] : memref<1x128xf32, #tpu.memory_space<vmem>>, vector<1x128xf32>
    %19 = vector.broadcast %18 : vector<1x128xf32> to vector<2x128xf32>
    %20 = arith.addf %17, %19 : vector<2x128xf32>
    %cst_16 = arith.constant 0.00999999977 : f32
    %21 = vector.broadcast %cst_16 : f32 to vector<2x128xf32>
    %22 = arith.mulf %21, %20 : vector<2x128xf32>
    %23 = arith.maximumf %20, %22 : vector<2x128xf32>
    %24 = arith.truncf %23 : vector<2x128xf32> to vector<2x128xbf16>
    %c0_17 = arith.constant 0 : index
    %c0_18 = arith.constant 0 : index
    %25 = vector.load %arg8[%c0_17, %c0_18] : memref<128x128xbf16, #tpu.memory_space<vmem>>, vector<128x128xbf16>
    %cst_19 = arith.constant dense<0.000000e+00> : vector<2x128xf32>
    %26 = tpu.matmul %24, %25, %cst_19 {dimension_numbers = #tpu.dot_dimension_numbers<[1], [0], [0], [1], [0, 0, 1, 1], [], []>} : vector<2x128xbf16>, vector<128x128xbf16>, vector<2x128xf32> -> vector<2x128xf32>
    %c0_20 = arith.constant 0 : index
    %c0_21 = arith.constant 0 : index
    %27 = vector.load %arg9[%c0_20, %c0_21] : memref<1x128xf32, #tpu.memory_space<vmem>>, vector<1x128xf32>
    %28 = vector.broadcast %27 : vector<1x128xf32> to vector<2x128xf32>
    %29 = arith.addf %26, %28 : vector<2x128xf32>
    %30 = vector.extract_strided_slice %29 {offsets = [0, 0], sizes = [2, 1], strides = [1, 1]} : vector<2x128xf32> to vector<2x1xf32>
    %c0_22 = arith.constant 0 : index
    %c0_23 = arith.constant 0 : index
    %31 = vector.load %arg10[%c0_22, %c0_23] : memref<2x1xf32, #tpu.memory_space<vmem>>, vector<2x1xf32>
    tpu.vector_store %arg10[%c0_22, %c0_23], %30 {strides = array<i32>} : memref<2x1xf32, #tpu.memory_space<vmem>>, vector<2x1xf32>,
    return
  }
  func.func @transform_0(%arg0: i32) -> (i32, i32) {
    %c0_i32 = arith.constant 0 : i32
    %c0_i32_0 = arith.constant 0 : i32
    return %arg0, %c0_i32 : i32, i32
  }
  func.func @transform_1(%arg0: i32) -> (i32, i32) {
    %c0_i32 = arith.constant 0 : i32
    %c0_i32_0 = arith.constant 0 : i32
    return %arg0, %c0_i32 : i32, i32
  }
  func.func @transform_2(%arg0: i32) -> (i32, i32) {
    %c0_i32 = arith.constant 0 : i32
    %c0_i32_0 = arith.constant 0 : i32
    %c0_i32_1 = arith.constant 0 : i32
    return %c0_i32, %c0_i32_0 : i32, i32
  }
  func.func @transform_3(%arg0: i32) -> (i32, i32) {
    %c0_i32 = arith.constant 0 : i32
    %c0_i32_0 = arith.constant 0 : i32
    %c0_i32_1 = arith.constant 0 : i32
    return %c0_i32, %c0_i32_0 : i32, i32
  }
  func.func @transform_4(%arg0: i32) -> (i32, i32) {
    %c0_i32 = arith.constant 0 : i32
    %c0_i32_0 = arith.constant 0 : i32
    %c0_i32_1 = arith.constant 0 : i32
    return %c0_i32, %c0_i32_0 : i32, i32
  }
  func.func @transform_5(%arg0: i32) -> (i32, i32) {
    %c0_i32 = arith.constant 0 : i32
    %c0_i32_0 = arith.constant 0 : i32
    %c0_i32_1 = arith.constant 0 : i32
    return %c0_i32, %c0_i32_0 : i32, i32
  }
  func.func @transform_6(%arg0: i32) -> (i32, i32) {
    %c0_i32 = arith.constant 0 : i32
    %c0_i32_0 = arith.constant 0 : i32
    %c0_i32_1 = arith.constant 0 : i32
    return %c0_i32, %c0_i32_0 : i32, i32
  }
  func.func @transform_7(%arg0: i32) -> (i32, i32) {
    %c0_i32 = arith.constant 0 : i32
    %c0_i32_0 = arith.constant 0 : i32
    %c0_i32_1 = arith.constant 0 : i32
    return %c0_i32, %c0_i32_0 : i32, i32
  }
  func.func @transform_8(%arg0: i32) -> (i32, i32) {
    %c0_i32 = arith.constant 0 : i32
    %c0_i32_0 = arith.constant 0 : i32
    %c0_i32_1 = arith.constant 0 : i32
    return %c0_i32, %c0_i32_0 : i32, i32
  }
  func.func @transform_9(%arg0: i32) -> (i32, i32) {
    %c0_i32 = arith.constant 0 : i32
    %c0_i32_0 = arith.constant 0 : i32
    return %arg0, %c0_i32 : i32, i32
  }
}

</mosaic_0001>

<llo_original>
// kernel: tpu_custom_call.1
$region0: #{tpu_custom_call.1}
  #allocation0 [shape = 'u32[]', space=smem, size = 0x4, offset = 0x4, fixed_abs, tag = 'smem constant byte address 0x4 - core index']
  #allocation1 [shape = 'u32[144,128]{1,0:T(1,128)}', space=vmem, size = 0x12000, scoped, tag = 'internal scratch']
  %s0 = inlined_call_operand.hbm [shape: f32[2,256], index: 0, kind: input, shape index: {}]
  %s1 = inlined_call_operand.vmem [shape: f32[2,40], index: 1, kind: input, shape index: {}]
  %s2 = inlined_call_operand.hbm [shape: bf16[256,128], index: 2, kind: input, shape index: {}]
  %s3 = inlined_call_operand.hbm [shape: bf16[40,128], index: 3, kind: input, shape index: {}]
  %s4 = inlined_call_operand.vmem [shape: f32[1,128], index: 4, kind: input, shape index: {}]
  %s5 = inlined_call_operand.hbm [shape: bf16[128,128], index: 5, kind: input, shape index: {}]
  %s6 = inlined_call_operand.vmem [shape: f32[1,128], index: 6, kind: input, shape index: {}]
  %s7 = inlined_call_operand.hbm [shape: bf16[128,128], index: 7, kind: input, shape index: {}]
  %s8 = inlined_call_operand.vmem [shape: f32[1,128], index: 8, kind: input, shape index: {}]
  %s9 = inlined_call_operand.vmem [shape: f32[2,1], index: 9, kind: output, shape index: {}]
  %s10 = sld [smem:[#allocation0]]
  $region66: #{tpu_custom_call.1} parent=0
    _
  %s12 = ssub.s32 1, %s10
  %s13 = scalar_select 0, %s12, %s10
  $region1: #{tpu_custom_call.1} parent=0
    #allocation2 [shape = 'u8[2048]{0}', space=vmem, size = 0x800, scoped, tag = 'input window, operand 0, single buffered']
    #allocation3 [shape = 's32[1]{0}', space=sflag, size = 0x4, scoped, tag = 'scoped memory for tpu_custom_call.1']
    #allocation4 [shape = 'u8[65536]{0}', space=vmem, size = 0x10000, scoped, tag = 'input window, operand 2, single buffered']
    #allocation5 [shape = 's32[1]{0}', space=sflag, size = 0x4, scoped, tag = 'scoped memory for tpu_custom_call.1']
    #allocation6 [shape = 'u8[10240]{0}', space=vmem, size = 0x2800, scoped, tag = 'input window, operand 3, single buffered']
    #allocation7 [shape = 'u8[32768]{0}', space=vmem, size = 0x8000, scoped, tag = 'input window, operand 5, single buffered']
    #allocation8 [shape = 's32[1]{0}', space=sflag, size = 0x4, scoped, tag = 'scoped memory for tpu_custom_call.1']
    #allocation9 [shape = 'u8[32768]{0}', space=vmem, size = 0x8000, scoped, tag = 'input window, operand 7, single buffered']
    %14 = vsyncpa [#allocation3], 0
    %15 = vsyncpa [#allocation5], 0
    %16 = vsyncpa [#allocation8], 0
    // Predicated region
    $region2: #{tpu_custom_call.1} parent=1 // pred_check
      _
    $region3: #{tpu_custom_call.1} parent=1 // pred_check_branch
      %18 = sbr.rel (0) target = $region5
    $region4: #{tpu_custom_call.1} parent=1 // pred_region
      %s20 = ssub.s32 64, 64
      %21 = vsyncadd [#allocation3], %s20
      %s23 = sshll.u32 [#allocation2], 4
      %s24 = int_to_ptr.vmem [resolvable:$true] %s23
      %26 = dma.hbm_to_vmem [thread:$0]  %s0, 64, %s24, [#allocation3]
    $region5: #{tpu_custom_call.1} parent=1 // pred_fallthru
      _
    // Predicated region
    $region6: #{tpu_custom_call.1} parent=1 // pred_check
      _
    $region7: #{tpu_custom_call.1} parent=1 // pred_check_branch
      %28 = sbr.rel (0) target = $region9
    $region8: #{tpu_custom_call.1} parent=1 // pred_region
      _
    $region9: #{tpu_custom_call.1} parent=1 // pred_fallthru
      _
    // Predicated region
    $region10: #{tpu_custom_call.1} parent=1 // pred_check
      _
    $region11: #{tpu_custom_call.1} parent=1 // pred_check_branch
      %30 = sbr.rel (0) target = $region13
    $region12: #{tpu_custom_call.1} parent=1 // pred_region
      %s32 = ssub.s32 2048, 2048
      %33 = vsyncadd [#allocation5], %s32
      %s34 = sshll.u32 [#allocation4], 4
      %s35 = int_to_ptr.vmem [resolvable:$true] %s34
      %40 = dma.hbm_to_vmem [thread:$0]  %s2, 2048, %s35, [#allocation5], 64, 64, 4
    $region13: #{tpu_custom_call.1} parent=1 // pred_fallthru
      _
    // Predicated region
    $region14: #{tpu_custom_call.1} parent=1 // pred_check
      _
    $region15: #{tpu_custom_call.1} parent=1 // pred_check_branch
      %42 = sbr.rel (0) target = $region17
    $region16: #{tpu_custom_call.1} parent=1 // pred_region
      %s44 = ssub.s32 320, 320
      %45 = vsyncadd [#allocation5], %s44
      %s46 = sshll.u32 [#allocation6], 4
      %s47 = int_to_ptr.vmem [resolvable:$true] %s46
      %52 = dma.hbm_to_vmem [thread:$0]  %s3, 320, %s47, [#allocation5], 64, 64, 4
    $region17: #{tpu_custom_call.1} parent=1 // pred_fallthru
      _
    // Predicated region
    $region18: #{tpu_custom_call.1} parent=1 // pred_check
      _
    $region19: #{tpu_custom_call.1} parent=1 // pred_check_branch
      %54 = sbr.rel (0) target = $region21
    $region20: #{tpu_custom_call.1} parent=1 // pred_region
      _
    $region21: #{tpu_custom_call.1} parent=1 // pred_fallthru
      _
    // Predicated region
    $region22: #{tpu_custom_call.1} parent=1 // pred_check
      _
    $region23: #{tpu_custom_call.1} parent=1 // pred_check_branch
      %56 = sbr.rel (0) target = $region25
    $region24: #{tpu_custom_call.1} parent=1 // pred_region
      %s58 = ssub.s32 1024, 1024
      %59 = vsyncadd [#allocation8], %s58
      %s60 = sshll.u32 [#allocation7], 4
      %s61 = int_to_ptr.vmem [resolvable:$true] %s60
      %66 = dma.hbm_to_vmem [thread:$0]  %s5, 1024, %s61, [#allocation8], 64, 64, 4
    $region25: #{tpu_custom_call.1} parent=1 // pred_fallthru
      _
    // Predicated region
    $region26: #{tpu_custom_call.1} parent=1 // pred_check
      _
    $region27: #{tpu_custom_call.1} parent=1 // pred_check_branch
      %68 = sbr.rel (0) target = $region29
    $region28: #{tpu_custom_call.1} parent=1 // pred_region
      _
    $region29: #{tpu_custom_call.1} parent=1 // pred_fallthru
      _
    // Predicated region
    $region30: #{tpu_custom_call.1} parent=1 // pred_check
      _
    $region31: #{tpu_custom_call.1} parent=1 // pred_check_branch
      %70 = sbr.rel (0) target = $region33
    $region32: #{tpu_custom_call.1} parent=1 // pred_region
      %s72 = ssub.s32 1024, 1024
      %73 = vsyncadd [#allocation8], %s72
      %s74 = sshll.u32 [#allocation9], 4
      %s75 = int_to_ptr.vmem [resolvable:$true] %s74
      %80 = dma.hbm_to_vmem [thread:$0]  %s7, 1024, %s75, [#allocation8], 64, 64, 4
    $region33: #{tpu_custom_call.1} parent=1 // pred_fallthru
      _
    // Predicated region
    $region34: #{tpu_custom_call.1} parent=1 // pred_check
      _
    $region35: #{tpu_custom_call.1} parent=1 // pred_check_branch
      %82 = sbr.rel (0) target = $region37
    $region36: #{tpu_custom_call.1} parent=1 // pred_region
      _
    $region37: #{tpu_custom_call.1} parent=1 // pred_fallthru
      _
    // Predicated region
    $region38: #{tpu_custom_call.1} parent=1 // pred_check
      _
    $region39: #{tpu_custom_call.1} parent=1 // pred_check_branch
      %84 = sbr.rel (0) target = $region41
    $region40: #{tpu_custom_call.1} parent=1 // pred_region
      %85 = dma.done [#allocation3], 64
    $region41: #{tpu_custom_call.1} parent=1 // pred_fallthru
      _
    // Predicated region
    $region42: #{tpu_custom_call.1} parent=1 // pred_check
      _
    $region43: #{tpu_custom_call.1} parent=1 // pred_check_branch
      %87 = sbr.rel (0) target = $region45
    $region44: #{tpu_custom_call.1} parent=1 // pred_region
      %88 = dma.done [#allocation5], 2048
    $region45: #{tpu_custom_call.1} parent=1 // pred_fallthru
      _
    // Predicated region
    $region46: #{tpu_custom_call.1} parent=1 // pred_check
      _
    $region47: #{tpu_custom_call.1} parent=1 // pred_check_branch
      %90 = sbr.rel (0) target = $region49
    $region48: #{tpu_custom_call.1} parent=1 // pred_region
      %91 = dma.done [#allocation5], 320
    $region49: #{tpu_custom_call.1} parent=1 // pred_fallthru
      _
    // Predicated region
    $region50: #{tpu_custom_call.1} parent=1 // pred_check
      _
    $region51: #{tpu_custom_call.1} parent=1 // pred_check_branch
      %93 = sbr.rel (0) target = $region53
    $region52: #{tpu_custom_call.1} parent=1 // pred_region
      %94 = dma.done [#allocation8], 1024
    $region53: #{tpu_custom_call.1} parent=1 // pred_fallthru
      _
    // Predicated region
    $region54: #{tpu_custom_call.1} parent=1 // pred_check
      _
    $region55: #{tpu_custom_call.1} parent=1 // pred_check_branch
      %96 = sbr.rel (0) target = $region57
    $region56: #{tpu_custom_call.1} parent=1 // pred_region
      %97 = dma.done [#allocation8], 1024
    $region57: #{tpu_custom_call.1} parent=1 // pred_fallthru
      _
    %v99 = vld [vmem:[#allocation2] sm:$0xf]
    %v102 = vunpack.c.l.s4 1983009808
    %v103 = vunpack.c.0.s8 %v102
    %v104 = vlaneseq
    %v105 = vshrl.u32 %v104, 7
    %v106 = vsub.s32 %v103, %v105
    %v107 = vrot.slane %v99, %v106
    %v108 = vcombine.high %v107, %v107
    %v111 = vpack.c.bf16 %v107, %v107
    %v112 = vpack.c.bf16 %v108, %v108
    %v113 = vld [vmem:[%s1] sm:$0x3]
    %v114 = vpack.c.bf16 %v113, %v113
    %v115 = vld [vmem:[#allocation4] sm:$0xf]
    %v116 = vld [vmem:[#allocation4 + $0x4] sm:$0xf]
    %v117 = vld [vmem:[#allocation4 + $0x8] sm:$0xf]
    %v118 = vld [vmem:[#allocation4 + $0xc] sm:$0xf]
    %v119 = vld [vmem:[#allocation4 + $0x10] sm:$0xf]
    %v120 = vld [vmem:[#allocation4 + $0x14] sm:$0xf]
    %v121 = vld [vmem:[#allocation4 + $0x18] sm:$0xf]
    %v122 = vld [vmem:[#allocation4 + $0x1c] sm:$0xf]
    %v123 = vld [vmem:[#allocation4 + $0x20] sm:$0xf]
    %v124 = vld [vmem:[#allocation4 + $0x24] sm:$0xf]
    %v125 = vld [vmem:[#allocation4 + $0x28] sm:$0xf]
    %v126 = vld [vmem:[#allocation4 + $0x2c] sm:$0xf]
    %v127 = vld [vmem:[#allocation4 + $0x30] sm:$0xf]
    %v128 = vld [vmem:[#allocation4 + $0x34] sm:$0xf]
    %v129 = vld [vmem:[#allocation4 + $0x38] sm:$0xf]
    %v130 = vld [vmem:[#allocation4 + $0x3c] sm:$0xf]
    %v131 = vld [vmem:[#allocation4 + $0x40] sm:$0xf]
    %v132 = vld [vmem:[#allocation4 + $0x44] sm:$0xf]
    %v133 = vld [vmem:[#allocation4 + $0x48] sm:$0xf]
    %v134 = vld [vmem:[#allocation4 + $0x4c] sm:$0xf]
    %v135 = vld [vmem:[#allocation4 + $0x50] sm:$0xf]
    %v136 = vld [vmem:[#allocation4 + $0x54] sm:$0xf]
    %v137 = vld [vmem:[#allocation4 + $0x58] sm:$0xf]
    %v138 = vld [vmem:[#allocation4 + $0x5c] sm:$0xf]
    %v139 = vld [vmem:[#allocation4 + $0x60] sm:$0xf]
    %v140 = vld [vmem:[#allocation4 + $0x64] sm:$0xf]
    %v141 = vld [vmem:[#allocation4 + $0x68] sm:$0xf]
    %v142 = vld [vmem:[#allocation4 + $0x6c] sm:$0xf]
    %v143 = vld [vmem:[#allocation4 + $0x70] sm:$0xf]
    %v144 = vld [vmem:[#allocation4 + $0x74] sm:$0xf]
    %v145 = vld [vmem:[#allocation4 + $0x78] sm:$0xf]
    %v146 = vld [vmem:[#allocation4 + $0x7c] sm:$0xf]
    %v147 = vld [vmem:[#allocation6] sm:$0xf]
    %v148 = vld [vmem:[#allocation6 + $0x4] sm:$0xf]
    %v149 = vld [vmem:[#allocation6 + $0x8] sm:$0xf]
    %v150 = vld [vmem:[#allocation6 + $0xc] sm:$0xf]
    %v151 = vld [vmem:[#allocation6 + $0x10] sm:$0xf]
    %v157 = vunpack.c.l.b16 %v147
    %v158 = vunpack.c.l.b16 %v148
    %v159 = vunpack.c.l.b16 %v149
    %v160 = vunpack.c.l.b16 %v150
    %v161 = vunpack.c.l.b16 %v151
    %v162 = vpack.c.b16 %v158, %v157
    %v163 = vpack.c.b16 %v160, %v159
    %v164 = vpack.c.b16 %v161, %v161
    %vm167 = vcmask 326656
    %v169 = vsel %vm167, %v114, 0
    %vm171 = vcmask 1043456
    %v173 = vsel %vm171, %v164, 0
    %175 = vmatprep.subr.bf16.mxu0 0
    %176 = vmatpush1.bf16.msra.mxu0 %v162
    %177 = vmatprep.subr.bf16.mxu0 0
    %178 = vmatpush1.bf16.msra.mxu0 %v163
    %179 = vmatprep.subr.bf16.mxu0 0
    %180 = vmatpush1.bf16.msra.mxu0 %v173
    %181 = vmatprep.subr.bf16.mxu0 0
    %182 = vmatpush1.bf16.msra.mxu0 0
    %183 = vmatprep.subr.bf16.mxu0 0
    %184 = vmatpush1.bf16.msra.mxu0 0
    %185 = vmatprep.subr.bf16.mxu0 0
    %186 = vmatpush1.bf16.msra.mxu0 0
    %187 = vmatprep.subr.bf16.mxu0 0
    %188 = vmatpush1.bf16.msra.mxu0 0
    %189 = vmatprep.subr.bf16.mxu0 0
    %190 = vmatpush1.bf16.msra.mxu0 0
    %191 = vmatprep.subr.bf16.mxu0 0
    %192 = vmatpush1.bf16.msra.mxu0 0
    %193 = vmatprep.subr.bf16.mxu0 0
    %194 = vmatpush1.bf16.msra.mxu0 0
    %195 = vmatprep.subr.bf16.mxu0 0
    %196 = vmatpush1.bf16.msra.mxu0 0
    %197 = vmatprep.subr.bf16.mxu0 0
    %198 = vmatpush1.bf16.msra.mxu0 0
    %199 = vmatprep.subr.bf16.mxu0 0
    %200 = vmatpush1.bf16.msra.mxu0 0
    %201 = vmatprep.subr.bf16.mxu0 0
    %202 = vmatpush1.bf16.msra.mxu0 0
    %203 = vmatprep.subr.bf16.mxu0 0
    %204 = vmatpush1.bf16.msra.mxu0 0
    %205 = vmatprep.subr.bf16.mxu0 0
    %206 = vmatpush1.bf16.msra.mxu0 0
    %207 = vmatprep.mubr.bf16.mxu0 0
    %208 = vmatmul.mubr.bf16.gmra.mrb[0].mxu0 %v169
    %v209 = vpop.f32.mrb[0].mxu0
    %v210 = vadd.f32 0.0, %v209
    %v211 = vpop.f32.mrb[0].mxu0
    %v212 = vpop.f32.mrb[0].mxu0
    %v213 = vpop.f32.mrb[0].mxu0
    %214 = vdwg.mxu0
    %v247 = vunpack.c.l.b16 %v115
    %v248 = vunpack.c.l.b16 %v116
    %v249 = vunpack.c.l.b16 %v117
    %v250 = vunpack.c.l.b16 %v118
    %v251 = vunpack.c.l.b16 %v119
    %v252 = vunpack.c.l.b16 %v120
    %v253 = vunpack.c.l.b16 %v121
    %v254 = vunpack.c.l.b16 %v122
    %v255 = vunpack.c.l.b16 %v123
    %v256 = vunpack.c.l.b16 %v124
    %v257 = vunpack.c.l.b16 %v125
    %v258 = vunpack.c.l.b16 %v126
    %v259 = vunpack.c.l.b16 %v127
    %v260 = vunpack.c.l.b16 %v128
    %v261 = vunpack.c.l.b16 %v129
    %v262 = vunpack.c.l.b16 %v130
    %v263 = vunpack.c.l.b16 %v131
    %v264 = vunpack.c.l.b16 %v132
    %v265 = vunpack.c.l.b16 %v133
    %v266 = vunpack.c.l.b16 %v134
    %v267 = vunpack.c.l.b16 %v135
    %v268 = vunpack.c.l.b16 %v136
    %v269 = vunpack.c.l.b16 %v137
    %v270 = vunpack.c.l.b16 %v138
    %v271 = vunpack.c.l.b16 %v139
    %v272 = vunpack.c.l.b16 %v140
    %v273 = vunpack.c.l.b16 %v141
    %v274 = vunpack.c.l.b16 %v142
    %v275 = vunpack.c.l.b16 %v143
    %v276 = vunpack.c.l.b16 %v144
    %v277 = vunpack.c.l.b16 %v145
    %v278 = vunpack.c.l.b16 %v146
    %v279 = vpack.c.b16 %v248, %v247
    %v280 = vpack.c.b16 %v250, %v249
    %v281 = vpack.c.b16 %v252, %v251
    %v282 = vpack.c.b16 %v254, %v253
    %v283 = vpack.c.b16 %v256, %v255
    %v284 = vpack.c.b16 %v258, %v257
    %v285 = vpack.c.b16 %v260, %v259
    %v286 = vpack.c.b16 %v262, %v261
    %v287 = vpack.c.b16 %v264, %v263
    %v288 = vpack.c.b16 %v266, %v265
    %v289 = vpack.c.b16 %v268, %v267
    %v290 = vpack.c.b16 %v270, %v269
    %v291 = vpack.c.b16 %v272, %v271
    %v292 = vpack.c.b16 %v274, %v273
    %v293 = vpack.c.b16 %v276, %v275
    %v294 = vpack.c.b16 %v278, %v277
    %311 = vmatprep.subr.bf16.mxu0 0
    %312 = vmatpush1.bf16.msra.mxu0 %v279
    %313 = vmatprep.subr.bf16.mxu0 0
    %314 = vmatpush1.bf16.msra.mxu0 %v280
    %315 = vmatprep.subr.bf16.mxu0 0
    %316 = vmatpush1.bf16.msra.mxu0 %v281
    %317 = vmatprep.subr.bf16.mxu0 0
    %318 = vmatpush1.bf16.msra.mxu0 %v282
    %319 = vmatprep.subr.bf16.mxu0 0
    %320 = vmatpush1.bf16.msra.mxu0 %v283
    %321 = vmatprep.subr.bf16.mxu0 0
    %322 = vmatpush1.bf16.msra.mxu0 %v284
    %323 = vmatprep.subr.bf16.mxu0 0
    %324 = vmatpush1.bf16.msra.mxu0 %v285
    %325 = vmatprep.subr.bf16.mxu0 0
    %326 = vmatpush1.bf16.msra.mxu0 %v286
    %327 = vmatprep.subr.bf16.mxu0 0
    %328 = vmatpush1.bf16.msra.mxu0 %v287
    %329 = vmatprep.subr.bf16.mxu0 0
    %330 = vmatpush1.bf16.msra.mxu0 %v288
    %331 = vmatprep.subr.bf16.mxu0 0
    %332 = vmatpush1.bf16.msra.mxu0 %v289
    %333 = vmatprep.subr.bf16.mxu0 0
    %334 = vmatpush1.bf16.msra.mxu0 %v290
    %335 = vmatprep.subr.bf16.mxu0 0
    %336 = vmatpush1.bf16.msra.mxu0 %v291
    %337 = vmatprep.subr.bf16.mxu0 0
    %338 = vmatpush1.bf16.msra.mxu0 %v292
    %339 = vmatprep.subr.bf16.mxu0 0
    %340 = vmatpush1.bf16.msra.mxu0 %v293
    %341 = vmatprep.subr.bf16.mxu0 0
    %342 = vmatpush1.bf16.msra.mxu0 %v294
    %343 = vmatprep.mubr.bf16.mxu0 %v112
    %344 = vmatmul.mubr.bf16.gmra.mrb[0].mxu0 %v111
    %v345 = vpop.f32.mrb[0].mxu0
    %v346 = vadd.f32 %v210, %v345
    %v347 = vpop.f32.mrb[0].mxu0
    %v348 = vpop.f32.mrb[0].mxu0
    %v349 = vpop.f32.mrb[0].mxu0
    %350 = vdwg.mxu0
    %v351 = vld [vmem:[%s4] sm:$0x1]
    %v353 = vlaneseq
    %v354 = vshrl.u32 %v353, 7
    %v355 = vsub.s32 0, %v354
    %v356 = vrot.slane %v351, %v355
    %v358 = vadd.f32 %v346, %v356
    %v359 = vmul.f32 %v358, 0.01
    %v360 = vmax.f32 %v358, %v359
    %v361 = vpack.c.bf16 %v360, %v360
    %v362 = vld [vmem:[#allocation7] sm:$0xf]
    %v363 = vld [vmem:[#allocation7 + $0x4] sm:$0xf]
    %v364 = vld [vmem:[#allocation7 + $0x8] sm:$0xf]
    %v365 = vld [vmem:[#allocation7 + $0xc] sm:$0xf]
    %v366 = vld [vmem:[#allocation7 + $0x10] sm:$0xf]
    %v367 = vld [vmem:[#allocation7 + $0x14] sm:$0xf]
    %v368 = vld [vmem:[#allocation7 + $0x18] sm:$0xf]
    %v369 = vld [vmem:[#allocation7 + $0x1c] sm:$0xf]
    %v370 = vld [vmem:[#allocation7 + $0x20] sm:$0xf]
    %v371 = vld [vmem:[#allocation7 + $0x24] sm:$0xf]
    %v372 = vld [vmem:[#allocation7 + $0x28] sm:$0xf]
    %v373 = vld [vmem:[#allocation7 + $0x2c] sm:$0xf]
    %v374 = vld [vmem:[#allocation7 + $0x30] sm:$0xf]
    %v375 = vld [vmem:[#allocation7 + $0x34] sm:$0xf]
    %v376 = vld [vmem:[#allocation7 + $0x38] sm:$0xf]
    %v377 = vld [vmem:[#allocation7 + $0x3c] sm:$0xf]
    %v378 = vld [vmem:[%s6] sm:$0x1]
    %v380 = vlaneseq
    %v381 = vshrl.u32 %v380, 7
    %v382 = vsub.s32 0, %v381
    %v383 = vrot.slane %v378, %v382
    %v401 = vunpack.c.l.b16 %v362
    %v402 = vunpack.c.l.b16 %v363
    %v403 = vunpack.c.l.b16 %v364
    %v404 = vunpack.c.l.b16 %v365
    %v405 = vunpack.c.l.b16 %v366
    %v406 = vunpack.c.l.b16 %v367
    %v407 = vunpack.c.l.b16 %v368
    %v408 = vunpack.c.l.b16 %v369
    %v409 = vunpack.c.l.b16 %v370
    %v410 = vunpack.c.l.b16 %v371
    %v411 = vunpack.c.l.b16 %v372
    %v412 = vunpack.c.l.b16 %v373
    %v413 = vunpack.c.l.b16 %v374
    %v414 = vunpack.c.l.b16 %v375
    %v415 = vunpack.c.l.b16 %v376
    %v416 = vunpack.c.l.b16 %v377
    %v417 = vpack.c.b16 %v402, %v401
    %v418 = vpack.c.b16 %v404, %v403
    %v419 = vpack.c.b16 %v406, %v405
    %v420 = vpack.c.b16 %v408, %v407
    %v421 = vpack.c.b16 %v410, %v409
    %v422 = vpack.c.b16 %v412, %v411
    %v423 = vpack.c.b16 %v414, %v413
    %v424 = vpack.c.b16 %v416, %v415
    %433 = vmatprep.subr.bf16.mxu0 0
    %434 = vmatpush1.bf16.msra.mxu0 %v417
    %435 = vmatprep.subr.bf16.mxu0 0
    %436 = vmatpush1.bf16.msra.mxu0 %v418
    %437 = vmatprep.subr.bf16.mxu0 0
    %438 = vmatpush1.bf16.msra.mxu0 %v419
    %439 = vmatprep.subr.bf16.mxu0 0
    %440 = vmatpush1.bf16.msra.mxu0 %v420
    %441 = vmatprep.subr.bf16.mxu0 0
    %442 = vmatpush1.bf16.msra.mxu0 %v421
    %443 = vmatprep.subr.bf16.mxu0 0
    %444 = vmatpush1.bf16.msra.mxu0 %v422
    %445 = vmatprep.subr.bf16.mxu0 0
    %446 = vmatpush1.bf16.msra.mxu0 %v423
    %447 = vmatprep.subr.bf16.mxu0 0
    %448 = vmatpush1.bf16.msra.mxu0 %v424
    %449 = vmatprep.subr.bf16.mxu0 0
    %450 = vmatpush1.bf16.msra.mxu0 0
    %451 = vmatprep.subr.bf16.mxu0 0
    %452 = vmatpush1.bf16.msra.mxu0 0
    %453 = vmatprep.subr.bf16.mxu0 0
    %454 = vmatpush1.bf16.msra.mxu0 0
    %455 = vmatprep.subr.bf16.mxu0 0
    %456 = vmatpush1.bf16.msra.mxu0 0
    %457 = vmatprep.subr.bf16.mxu0 0
    %458 = vmatpush1.bf16.msra.mxu0 0
    %459 = vmatprep.subr.bf16.mxu0 0
    %460 = vmatpush1.bf16.msra.mxu0 0
    %461 = vmatprep.subr.bf16.mxu0 0
    %462 = vmatpush1.bf16.msra.mxu0 0
    %463 = vmatprep.subr.bf16.mxu0 0
    %464 = vmatpush1.bf16.msra.mxu0 0
    %465 = vmatprep.mubr.bf16.mxu0 0
    %466 = vmatmul.mubr.bf16.gmra.mrb[0].mxu0 %v361
    %v467 = vpop.f32.mrb[0].mxu0
    %v468 = vadd.f32 %v383, %v467
    %v469 = vpop.f32.mrb[0].mxu0
    %v470 = vpop.f32.mrb[0].mxu0
    %v471 = vpop.f32.mrb[0].mxu0
    %472 = vdwg.mxu0
    %v473 = vmul.f32 %v468, 0.01
    %v474 = vmax.f32 %v468, %v473
    %v475 = vpack.c.bf16 %v474, %v474
    %v476 = vld [vmem:[#allocation9] sm:$0xf]
    %v477 = vld [vmem:[#allocation9 + $0x4] sm:$0xf]
    %v478 = vld [vmem:[#allocation9 + $0x8] sm:$0xf]
    %v479 = vld [vmem:[#allocation9 + $0xc] sm:$0xf]
    %v480 = vld [vmem:[#allocation9 + $0x10] sm:$0xf]
    %v481 = vld [vmem:[#allocation9 + $0x14] sm:$0xf]
    %v482 = vld [vmem:[#allocation9 + $0x18] sm:$0xf]
    %v483 = vld [vmem:[#allocation9 + $0x1c] sm:$0xf]
    %v484 = vld [vmem:[#allocation9 + $0x20] sm:$0xf]
    %v485 = vld [vmem:[#allocation9 + $0x24] sm:$0xf]
    %v486 = vld [vmem:[#allocation9 + $0x28] sm:$0xf]
    %v487 = vld [vmem:[#allocation9 + $0x2c] sm:$0xf]
    %v488 = vld [vmem:[#allocation9 + $0x30] sm:$0xf]
    %v489 = vld [vmem:[#allocation9 + $0x34] sm:$0xf]
    %v490 = vld [vmem:[#allocation9 + $0x38] sm:$0xf]
    %v491 = vld [vmem:[#allocation9 + $0x3c] sm:$0xf]
    %v492 = vld [vmem:[%s8] sm:$0x1]
    %v494 = vlaneseq
    %v495 = vshrl.u32 %v494, 7
    %v496 = vsub.s32 0, %v495
    %v497 = vrot.slane %v492, %v496
    %v515 = vunpack.c.l.b16 %v476
    %v516 = vunpack.c.l.b16 %v477
    %v517 = vunpack.c.l.b16 %v478
    %v518 = vunpack.c.l.b16 %v479
    %v519 = vunpack.c.l.b16 %v480
    %v520 = vunpack.c.l.b16 %v481
    %v521 = vunpack.c.l.b16 %v482
    %v522 = vunpack.c.l.b16 %v483
    %v523 = vunpack.c.l.b16 %v484
    %v524 = vunpack.c.l.b16 %v485
    %v525 = vunpack.c.l.b16 %v486
    %v526 = vunpack.c.l.b16 %v487
    %v527 = vunpack.c.l.b16 %v488
    %v528 = vunpack.c.l.b16 %v489
    %v529 = vunpack.c.l.b16 %v490
    %v530 = vunpack.c.l.b16 %v491
    %v531 = vpack.c.b16 %v516, %v515
    %v532 = vpack.c.b16 %v518, %v517
    %v533 = vpack.c.b16 %v520, %v519
    %v534 = vpack.c.b16 %v522, %v521
    %v535 = vpack.c.b16 %v524, %v523
    %v536 = vpack.c.b16 %v526, %v525
    %v537 = vpack.c.b16 %v528, %v527
    %v538 = vpack.c.b16 %v530, %v529
    %547 = vmatprep.subr.bf16.mxu0 0
    %548 = vmatpush1.bf16.msra.mxu0 %v531
    %549 = vmatprep.subr.bf16.mxu0 0
    %550 = vmatpush1.bf16.msra.mxu0 %v532
    %551 = vmatprep.subr.bf16.mxu0 0
    %552 = vmatpush1.bf16.msra.mxu0 %v533
    %553 = vmatprep.subr.bf16.mxu0 0
    %554 = vmatpush1.bf16.msra.mxu0 %v534
    %555 = vmatprep.subr.bf16.mxu0 0
    %556 = vmatpush1.bf16.msra.mxu0 %v535
    %557 = vmatprep.subr.bf16.mxu0 0
    %558 = vmatpush1.bf16.msra.mxu0 %v536
    %559 = vmatprep.subr.bf16.mxu0 0
    %560 = vmatpush1.bf16.msra.mxu0 %v537
    %561 = vmatprep.subr.bf16.mxu0 0
    %562 = vmatpush1.bf16.msra.mxu0 %v538
    %563 = vmatprep.subr.bf16.mxu0 0
    %564 = vmatpush1.bf16.msra.mxu0 0
    %565 = vmatprep.subr.bf16.mxu0 0
    %566 = vmatpush1.bf16.msra.mxu0 0
    %567 = vmatprep.subr.bf16.mxu0 0
    %568 = vmatpush1.bf16.msra.mxu0 0
    %569 = vmatprep.subr.bf16.mxu0 0
    %570 = vmatpush1.bf16.msra.mxu0 0
    %571 = vmatprep.subr.bf16.mxu0 0
    %572 = vmatpush1.bf16.msra.mxu0 0
    %573 = vmatprep.subr.bf16.mxu0 0
    %574 = vmatpush1.bf16.msra.mxu0 0
    %575 = vmatprep.subr.bf16.mxu0 0
    %576 = vmatpush1.bf16.msra.mxu0 0
    %577 = vmatprep.subr.bf16.mxu0 0
    %578 = vmatpush1.bf16.msra.mxu0 0
    %579 = vmatprep.mubr.bf16.mxu0 0
    %580 = vmatmul.mubr.bf16.gmra.mrb[0].mxu0 %v475
    %v581 = vpop.f32.mrb[0].mxu0
    %v582 = vadd.f32 %v497, %v581
    %v583 = vpop.f32.mrb[0].mxu0
    %v584 = vpop.f32.mrb[0].mxu0
    %v585 = vpop.f32.mrb[0].mxu0
    %586 = vdwg.mxu0
    %vm587 = vcmask 1024
    %588 = vst.msk [vmem:[%s9] sm:$0x3] %vm587, %v582
    // Predicated region
    $region58: #{tpu_custom_call.1} parent=1 // pred_check
      _
    $region59: #{tpu_custom_call.1} parent=1 // pred_check_branch
      %590 = sbr.rel (0) target = $region61
    $region60: #{tpu_custom_call.1} parent=1 // pred_region
      _
    $region61: #{tpu_custom_call.1} parent=1 // pred_fallthru
      _
    // Predicated region
    $region62: #{tpu_custom_call.1} parent=1 // pred_check
      _
    $region63: #{tpu_custom_call.1} parent=1 // pred_check_branch
      %592 = sbr.rel (0) target = $region65
    $region64: #{tpu_custom_call.1} parent=1 // pred_region
      _
    $region65: #{tpu_custom_call.1} parent=1 // pred_fallthru
      _
    %593 = vsyncpa [#allocation3], 1
    %594 = vsyncpa [#allocation5], 1
    %595 = vsyncpa [#allocation8], 1

</llo_original>
